<compile_context>
chip_gen: v5e
topology: v5e:2x2
jax: 0.10.0
libtpu: 0.0.40
codegen_flags: <defaults>
</compile_context>

<pallas_src>
import functools

import jax
import jax.numpy as jnp
from jax import lax
from jax.experimental import pallas as pl
from jax.experimental.pallas import tpu as pltpu


def _round_up(x, m):
    return (x + m - 1) // m * m


def _vmem_budget_bytes():
    # Per-generation VMEM budget (v5e/v6e: 128 MiB physical, v7x: 64 MiB).
    try:
        cap = int(pltpu.get_tpu_info().vmem_capacity_bytes)
    except Exception:
        cap = 64 * 1024 * 1024
    return min(cap // 2, 48 * 1024 * 1024)


_VMEM_BUDGET = _vmem_budget_bytes()


# ------------------------------------------------------------------
# Fused multi-operand matmul kernel:
#   out = post( sum_t act(A_t) @ B_t + bias )
# A_t:(TM,K_t) bf16 tiles, B_t:(K_t,TN) bf16, f32 accumulation, bf16 store.
# Grid is (M tiles, N tiles); the full K of each pair is resident per step, so
# weights are streamed exactly once (no K revisits, no K grid axis needed).
# ------------------------------------------------------------------
def _conv_kernel(*refs, n_pairs, pre_act, post_act):
    a_refs = refs[:n_pairs]
    b_refs = refs[n_pairs:2 * n_pairs]
    bias_ref = refs[2 * n_pairs]
    o_ref = refs[2 * n_pairs + 1]

    acc = None
    for t in range(n_pairs):
        a = a_refs[t][...]
        # NOTE(v5e): this select runs on packed bf16 vregs; it is filler under the
        # MXU / DMA bound on all generations measured so far.
        if pre_act == "leaky_relu":
            a = jnp.where(a > 0, a, 0.2 * a)
        elif pre_act == "relu":
            a = jnp.maximum(a, 0)
        d = jnp.dot(a, b_refs[t][...], preferred_element_type=jnp.float32)
        acc = d if acc is None else acc + d

    y = acc + bias_ref[...]
    if post_act == "tanh":
        y = jnp.tanh(y)
    o_ref[...] = y.astype(o_ref.dtype)


def _pick_tiles(M, Nc, K_total):
    """Tile sizes from the VMEM budget (double-buffered A/B + out + f32 acc)."""
    avail = _VMEM_BUDGET // 2   # leave 2x headroom for pipelining bookkeeping / acc

    # Output-column tile: full extent when small, else a 128-multiple divisor,
    # shrunk until the double-buffered weight slabs fit.
    if Nc <= 256:
        TN = Nc
    else:
        TN = Nc
        for cand in (512, 256, 128):
            if Nc % cand == 0:
                TN = cand
                break
        if TN != Nc:
            while TN > 128 and K_total * TN * 4 > (3 * avail) // 4:
                TN //= 2

    # Row tile: as big as the remaining budget allows (fewer grid steps, lane-dense
    # unmasked stores on the streaming layers).
    rem = max(avail - K_total * TN * 4, 0)
    tm = rem // max(K_total * 4 + TN * 8, 1)
    tm = max(8, min(4096, (tm // 8) * 8))
    Mr = _round_up(M, 8)
    if Mr <= tm:
        TM, Mp = Mr, Mr
    else:
        TM = tm
        Mp = _round_up(M, TM)

    # v7x megacore: if there is only one row block, expose >=2 column blocks.
    if Mp == TM and TN == Nc and Nc >= 256 and Nc % 256 == 0:
        TN = Nc // 2
    return TM, TN, Mp


def fused_conv(a_views, b_taps, bias=None, pre_act=None, post_act=None):
    """out = post(sum_t act(A_t) @ B_t + bias).  A_t:(M,K_t), B_t:(K_t,Nc).

    Returns the (Mp, Nc) bf16 output; rows beyond M are exact zeros (bias is only
    used on the outermost layer whose padded rows are discarded before use).
    """
    M = a_views[0].shape[0]
    Nc = b_taps[0].shape[1]
    K_list = [int(a.shape[1]) for a in a_views]
    K_total = sum(K_list)
    TM, TN, Mp = _pick_tiles(M, Nc, K_total)

    a_p = []
    for v in a_views:
        v = v.astype(jnp.bfloat16)
        if Mp != M:
            v = jnp.pad(v, ((0, Mp - M), (0, 0)))   # fused into the view-build fusion
        a_p.append(v)
    b_p = [b.astype(jnp.bfloat16) for b in b_taps]
    if bias is None:
        bias_arr = jnp.zeros((1, Nc), jnp.float32)
    else:
        bias_arr = bias.astype(jnp.float32).reshape(1, Nc)

    n_pairs = len(a_views)
    grid = (Mp // TM, Nc // TN)
    in_specs = (
        [pl.BlockSpec((TM, k), lambda i, j: (i, 0)) for k in K_list]
        + [pl.BlockSpec((k, TN), lambda i, j: (0, j)) for k in K_list]
        + [pl.BlockSpec((1, TN), lambda i, j: (0, j))]
    )
    out = pl.pallas_call(
        functools.partial(_conv_kernel, n_pairs=n_pairs,
                          pre_act=pre_act, post_act=post_act),
        out_shape=jax.ShapeDtypeStruct((Mp, Nc), jnp.bfloat16),
        grid=grid,
        in_specs=in_specs,
        out_specs=pl.BlockSpec((TM, TN), lambda i, j: (i, j)),
        compiler_params=pltpu.CompilerParams(
            dimension_semantics=("parallel", "parallel"),
            vmem_limit_bytes=_VMEM_BUDGET),
        cost_estimate=pl.CostEstimate(
            flops=2 * Mp * Nc * K_total,
            transcendentals=Mp * Nc if post_act == "tanh" else 0,
            bytes_accessed=2 * (Mp * K_total + K_total * Nc + Mp * Nc)),
    )(*a_p, *b_p, bias_arr)
    return out


# ------------------------------------------------------------------
# BatchNorm2d statistics: single fused pass emitting per-channel sum and sum-sq
# (f32 accumulators).  The normalization itself is applied lazily in the consumer
# conv's tap-view fusion, so the normalized tensor is never written to HBM.
# ------------------------------------------------------------------
def _stats_kernel(x_ref, sum_ref, ssq_ref):
    @pl.when(pl.program_id(0) == 0)
    def _():
        sum_ref[...] = jnp.zeros_like(sum_ref)
        ssq_ref[...] = jnp.zeros_like(ssq_ref)
    x = x_ref[...].astype(jnp.float32)
    sum_ref[...] += jnp.sum(x, axis=0, keepdims=True)
    ssq_ref[...] += jnp.sum(x * x, axis=0, keepdims=True)


def _pick_stat_tile(Mp, cap=2048):
    if Mp <= cap:
        return Mp
    start = (min(cap, Mp) // 8) * 8
    for d in range(start, 7, -8):        # multiples of 8 that divide Mp
        if Mp % d == 0:
            return d
    return Mp                            # fallback: single full-extent block


def batch_stats(x2d, count, eps=1e-5):
    """Per-channel (mean, 1/sqrt(var+eps)).  Zero pad rows do not affect the sums;
    `count` is the number of valid rows."""
    Mp, C = x2d.shape
    TMe = _pick_stat_tile(Mp)
    s, ss = pl.pallas_call(
        _stats_kernel,
        out_shape=(jax.ShapeDtypeStruct((1, C), jnp.float32),
                   jax.ShapeDtypeStruct((1, C), jnp.float32)),
        grid=(Mp // TMe,),
        in_specs=[pl.BlockSpec((TMe, C), lambda i: (i, 0))],
        out_specs=(pl.BlockSpec((1, C), lambda i: (0, 0)),
                   pl.BlockSpec((1, C), lambda i: (0, 0))),
        compiler_params=pltpu.CompilerParams(dimension_semantics=("arbitrary",)),
    )(x2d)
    mean = s / count
    var = jnp.maximum(ss / count - mean * mean, 0.0)
    inv = lax.rsqrt(var + eps)
    return mean, inv


# ------------------------------------------------------------------
# Tensor bundles: raw (un-normalized) conv output + deferred BN parameters.
# ------------------------------------------------------------------
def _bundle(raw2d, shape, mean=None, inv=None):
    return dict(raw=raw2d, shape=shape, mean=mean, inv=inv)


def _nhwc(t):
    """Lazy (fused by XLA) slice + reshape + BatchNorm-normalize to NHWC bf16."""
    n, h, w, c = t["shape"]
    x = t["raw"][: n * h * w].reshape(n, h, w, c)
    if t["mean"] is not None:
        x = (x.astype(jnp.float32) - t["mean"].reshape(1, 1, 1, c)) \
            * t["inv"].reshape(1, 1, 1, c)
        x = x.astype(jnp.bfloat16)
    return x


def _with_batchnorm(t, eps=1e-5):
    n, h, w, c = t["shape"]
    mean, inv = batch_stats(t["raw"], n * h * w, eps)
    return dict(raw=t["raw"], shape=t["shape"], mean=mean, inv=inv)


# ------------------------------------------------------------------
# Conv2d(k4,s2,p1, bias=False):  space-to-depth(2) + 2x2 conv, the 4 taps passed
# as 4 separate (M, 4C) operands (K folded in-kernel, no im2col concat in HBM).
# ------------------------------------------------------------------
def conv_down(x_t, b_taps, pre_act=None):
    x = _nhwc(x_t)
    n, h, w, c = x.shape
    ho, wo = h // 2, w // 2
    cout = b_taps[0].shape[1]
    xp = jnp.pad(x, ((0, 0), (1, 1), (1, 1), (0, 0)))
    s2d = xp.reshape(n, ho + 1, 2, wo + 1, 2, c)
    s2d = s2d.transpose(0, 1, 3, 2, 4, 5).reshape(n, ho + 1, wo + 1, 4 * c)
    views = [s2d[:, da:da + ho, db:db + wo, :].reshape(n * ho * wo, 4 * c)
             for da in (0, 1) for db in (0, 1)]
    raw = fused_conv(views, b_taps, pre_act=pre_act)
    return _bundle(raw, (n, ho, wo, cout))


# ------------------------------------------------------------------
# ConvTranspose2d(k4,s2,p1): phase (sub-pixel) decomposition on an extended
# (H+1)x(W+1) grid.  Multiple sources (the skip concat halves) are passed as
# separate operand pairs, so the concat is never materialized.
# ------------------------------------------------------------------
def conv_up(src_list, b_taps_per_src, bias=None, pre_act=None, post_act=None):
    n, h, w, _ = src_list[0]["shape"]
    he, we = h + 1, w + 1
    views, b_mats = [], []
    for src, taps in zip(src_list, b_taps_per_src):
        x = _nhwc(src)
        c = x.shape[-1]
        xp = jnp.pad(x, ((0, 0), (1, 1), (1, 1), (0, 0)))
        views += [xp[:, dh:dh + he, dw:dw + we, :].reshape(n * he * we, c)
                  for dh in (0, 1) for dw in (0, 1)]
        b_mats += taps
    cout = b_mats[0].shape[1] // 4
    raw = fused_conv(views, b_mats, bias=bias, pre_act=pre_act, post_act=post_act)
    # Phase interleave: u[n, 2m+p, 2l+q, :] = ext[n, m+p, l+q, p, q, :]  (one fusion).
    ext = raw[: n * he * we].reshape(n, he, we, 2, 2, cout)
    r = jnp.stack([ext[:, 0:h, :, 0], ext[:, 1:h + 1, :, 1]], axis=2)
    r = r.reshape(n, 2 * h, we, 2, cout)
    u = jnp.stack([r[:, :, 0:w, 0], r[:, :, 1:w + 1, 1]], axis=3)
    u = u.reshape(n, 2 * h, 2 * w, cout)
    return _bundle(u.reshape(n * 4 * h * w, cout), (n, 2 * h, 2 * w, cout))


# ------------------------------------------------------------------
# Weight rearrangement (done once at init).
# ------------------------------------------------------------------
def _conv_down_B_taps(w):
    """PyTorch Conv2d weight (Cout,Cin,4,4) -> 4 tap matrices (4*Cin, Cout).
    Tap t = da*2+db covers kernel rows 2da..2da+1 / cols 2db..2db+1; rows within a
    tap are ordered (row-phase a, col-phase b, ci), matching the s2d views."""
    cout, cin = w.shape[0], w.shape[1]
    t = w.transpose(2, 3, 1, 0)              # (kh, kw, ci, co)
    t = t.reshape(2, 2, 2, 2, cin, cout)     # (da, a, db, b, ci, co)
    t = t.transpose(0, 2, 1, 3, 4, 5)        # (da, db, a, b, ci, co)
    t = t.reshape(4, 4 * cin, cout).astype(jnp.bfloat16)
    return [t[i] for i in range(4)]


def _conv_transpose_B_taps(w, src_sizes):
    """PyTorch ConvTranspose2d weight (Cin,Cout,4,4) -> per-source lists of 4 tap
    matrices (C_s, 4*Cout).  Tap t = dh*2+dw; columns are phase-major
    ((p*2+q)*Cout + co):  B[ci, (p,q,co)] = w[ci, co, 3-p-2dh, 3-q-2dw]."""
    cin, cout = w.shape[0], w.shape[1]
    wr = w[:, :, ::-1, ::-1]
    t = wr.reshape(cin, cout, 2, 2, 2, 2)    # (ci, co, dh, p, dw, q)
    t = t.transpose(2, 4, 0, 3, 5, 1)        # (dh, dw, ci, p, q, co)
    t = t.reshape(4, cin, 4 * cout).astype(jnp.bfloat16)
    out, start = [], 0
    for sz in src_sizes:
        out.append([t[i, start:start + sz, :] for i in range(4)])
        start += sz
    return out


# ------------------------------------------------------------------
# UnetSkipConnectionBlock / UnetGenerator parameters + forward.
# ------------------------------------------------------------------
def _make_block(key, outer_nc, inner_nc, input_nc, submodule, outermost, innermost):
    if input_nc is None:
        input_nc = outer_nc
    k1, k2, k3 = jax.random.split(key, 3)
    w_down = jax.random.normal(k1, (inner_nc, input_nc, 4, 4), jnp.float32) * 0.02
    up_in = inner_nc if innermost else inner_nc * 2
    w_up = jax.random.normal(k2, (up_in, outer_nc, 4, 4), jnp.float32) * 0.02
    up_srcs = (up_in,) if innermost else (inner_nc, inner_nc)
    bias_up = None
    if outermost:   # only the outermost upconv has a bias (others use BatchNorm)
        b = jax.random.normal(k3, (outer_nc,), jnp.float32) * 0.02
        bias_up = jnp.tile(b, 4)             # replicate across the 4 phases
    return dict(
        down_taps=_conv_down_B_taps(w_down),
        up_taps=_conv_transpose_B_taps(w_up, up_srcs),
        bias_up=bias_up,
        outermost=outermost, innermost=innermost, submodule=submodule)


def init_unet_generator(key, input_nc, output_nc, num_downs, ngf=64):
    assert num_downs >= 5
    keys = jax.random.split(key, num_downs)
    blk = _make_block(keys[0], ngf * 8, ngf * 8, None, None, False, True)
    ki = 1
    for _ in range(num_downs - 5):
        blk = _make_block(keys[ki], ngf * 8, ngf * 8, None, blk, False, False); ki += 1
    blk = _make_block(keys[ki], ngf * 4, ngf * 8, None, blk, False, False); ki += 1
    blk = _make_block(keys[ki], ngf * 2, ngf * 4, None, blk, False, False); ki += 1
    blk = _make_block(keys[ki], ngf, ngf * 2, None, blk, False, False); ki += 1
    blk = _make_block(keys[ki], output_nc, ngf, input_nc, blk, True, False)
    return blk


def block_forward(blk, x_t):
    if blk["outermost"]:
        # down = [downconv]; up = [uprelu, upconv, tanh]; no skip concat
        h = conv_down(x_t, blk["down_taps"], pre_act=None)
        srcs = block_forward(blk["submodule"], h)
        return conv_up(srcs, blk["up_taps"], bias=blk["bias_up"],
                       pre_act="relu", post_act="tanh")
    elif blk["innermost"]:
        # down = [downrelu, downconv]; up = [uprelu, upconv, upnorm]; then cat
        h = conv_down(x_t, blk["down_taps"], pre_act="leaky_relu")
        u = conv_up([h], blk["up_taps"], pre_act="relu")
        u = _with_batchnorm(u)
        return [x_t, u]          # cat([x, model(x)]) kept as two un-materialized halves
    else:
        # down = [downrelu, downconv, downnorm]; up = [uprelu, upconv, upnorm]; then cat
        h = conv_down(x_t, blk["down_taps"], pre_act="leaky_relu")
        h = _with_batchnorm(h)
        srcs = block_forward(blk["submodule"], h)
        u = conv_up(srcs, blk["up_taps"], pre_act="relu")
        u = _with_batchnorm(u)
        return [x_t, u]


def unet_generator_forward(params, x_nchw):
    # NCHW (external, PyTorch-compatible) -> NHWC bf16 internal layout.
    x = jnp.transpose(x_nchw, (0, 2, 3, 1)).astype(jnp.bfloat16)
    n, h, w, c = x.shape
    x_t = _bundle(x.reshape(n * h * w, c), (n, h, w, c))
    out_t = block_forward(params, x_t)
    y = _nhwc(out_t)
    return jnp.transpose(y, (0, 3, 1, 2)).astype(jnp.float32)


# ------------------------------------------------------------------
# Numeric validation of the conv decompositions against lax references.
# ------------------------------------------------------------------
def _r32(a):
    return a.astype(jnp.bfloat16).astype(jnp.float32)


def _ref_conv_down(x, w, pre_act=None):
    xf = x.astype(jnp.float32)
    if pre_act == "leaky_relu":
        xf = jnp.where(xf > 0, xf, 0.2 * xf)
    rhs = jnp.transpose(w, (2, 3, 1, 0)).astype(jnp.float32)      # HWIO
    return lax.conv_general_dilated(xf, rhs, (2, 2), ((1, 1), (1, 1)),
                                    dimension_numbers=("NHWC", "HWIO", "NHWC"))


def _ref_conv_up(x, w, bias=None, pre_act=None, post_act=None):
    xf = x.astype(jnp.float32)
    if pre_act == "relu":
        xf = jnp.maximum(xf, 0.0)
    rhs = jnp.transpose(w[:, :, ::-1, ::-1], (2, 3, 0, 1)).astype(jnp.float32)
    y = lax.conv_general_dilated(xf, rhs, (1, 1), ((2, 2), (2, 2)),
                                 lhs_dilation=(2, 2),
                                 dimension_numbers=("NHWC", "HWIO", "NHWC"))
    if bias is not None:
        y = y + bias.reshape(1, 1, 1, -1)
    if post_act == "tanh":
        y = jnp.tanh(y)
    return y


def _pallas_conv_down(x, w, pre_act=None):
    n, h, wd, c = x.shape
    x_t = _bundle(x.astype(jnp.bfloat16).reshape(n * h * wd, c), (n, h, wd, c))
    return _nhwc(conv_down(x_t, _conv_down_B_taps(w), pre_act=pre_act)).astype(jnp.float32)


def _pallas_conv_up(srcs, w, src_sizes, bias=None, pre_act=None, post_act=None):
    taps = _conv_transpose_B_taps(w, src_sizes)
    bundles = []
    for s in srcs:
        n, h, wd, c = s.shape
        bundles.append(_bundle(s.astype(jnp.bfloat16).reshape(n * h * wd, c),
                               (n, h, wd, c)))
    bias4 = None if bias is None else jnp.tile(bias, 4)
    t = conv_up(bundles, taps, bias=bias4, pre_act=pre_act, post_act=post_act)
    return _nhwc(t).astype(jnp.float32)


def _check_close(name, got, want, rtol=0.03, atol=0.02):
    err = float(jnp.max(jnp.abs(got - want)))
    scale = float(jnp.max(jnp.abs(want)))
    assert err <= rtol * scale + atol, f"{name}: max err {err} (scale {scale})"


if __name__ == "__main__":
    key = jax.random.PRNGKey(0)
    kd1, kd2, ku1, ku2, ku3, kub, kp, kx = jax.random.split(key, 8)

    # --- building-block validation vs lax conv / conv-transpose references ---
    xv = jax.random.normal(kd1, (2, 8, 8, 6), jnp.float32)
    wv = jax.random.normal(kd2, (10, 6, 4, 4), jnp.float32) * 0.1
    _check_close("conv_down",
                 _pallas_conv_down(xv, wv, pre_act="leaky_relu"),
                 _ref_conv_down(_r32(xv), _r32(wv), pre_act="leaky_relu"))

    s0 = jax.random.normal(ku1, (2, 4, 4, 5), jnp.float32)
    s1 = jax.random.normal(ku2, (2, 4, 4, 5), jnp.float32)
    wu = jax.random.normal(ku3, (10, 7, 4, 4), jnp.float32) * 0.1
    bu = jax.random.normal(kub, (7,), jnp.float32) * 0.1
    _check_close("conv_transpose_up",
                 _pallas_conv_up([s0, s1], wu, (5, 5), bias=bu,
                                 pre_act="relu", post_act="tanh"),
                 _ref_conv_up(jnp.concatenate([_r32(s0), _r32(s1)], axis=-1), _r32(wu),
                              bias=bu, pre_act="relu", post_act="tanh"))

    # --- full UnetGenerator forward (num_downs=5 -> 32x32 input reaches 1x1) ---
    input_nc, output_nc, num_downs, ngf = 3, 3, 5, 8
    N, H, W = 2, 32, 32
    params = init_unet_generator(kp, input_nc, output_nc, num_downs, ngf)
    x = jax.random.normal(kx, (N, input_nc, H, W), jnp.float32)

    fwd = jax.jit(functools.partial(unet_generator_forward, params))
    out = jax.block_until_ready(fwd(x))
    assert out.shape == (N, output_nc, H, W), out.shape
    assert bool(jnp.all(jnp.isfinite(out)))
    assert bool(jnp.max(jnp.abs(out)) <= 1.0 + 1e-3)   # tanh output range
    print("KERNEL_OK")
</pallas_src>

<mosaic_0001>
module attributes {stable_mosaic.version = 11 : i64} {
  func.func @_conv_kernel(%arg0: i32, %arg1: i32, %arg2: memref<32x24xbf16, #tpu.memory_space<vmem>>, %arg3: memref<32x24xbf16, #tpu.memory_space<vmem>>, %arg4: memref<32x24xbf16, #tpu.memory_space<vmem>>, %arg5: memref<32x24xbf16, #tpu.memory_space<vmem>>, %arg6: memref<24x10xbf16, #tpu.memory_space<vmem>>, %arg7: memref<24x10xbf16, #tpu.memory_space<vmem>>, %arg8: memref<24x10xbf16, #tpu.memory_space<vmem>>, %arg9: memref<24x10xbf16, #tpu.memory_space<vmem>>, %arg10: memref<1x10xf32, #tpu.memory_space<vmem>>, %arg11: memref<32x10xbf16, #tpu.memory_space<vmem>>) attributes {dimension_semantics = [#tpu.dimension_semantics<parallel>, #tpu.dimension_semantics<parallel>], iteration_bounds = array<i64: 1, 1>, scalar_prefetch = 0 : i64, scratch_operands = 0 : i64, tpu.core_type = #tpu.core_type<tc>, window_params = [{transform_indices = @transform_0, window_bounds = array<i64: 32, 24>}, {transform_indices = @transform_1, window_bounds = array<i64: 32, 24>}, {transform_indices = @transform_2, window_bounds = array<i64: 32, 24>}, {transform_indices = @transform_3, window_bounds = array<i64: 32, 24>}, {transform_indices = @transform_4, window_bounds = array<i64: 24, 10>}, {transform_indices = @transform_5, window_bounds = array<i64: 24, 10>}, {transform_indices = @transform_6, window_bounds = array<i64: 24, 10>}, {transform_indices = @transform_7, window_bounds = array<i64: 24, 10>}, {transform_indices = @transform_8, window_bounds = array<i64: 1, 10>}, {transform_indices = @transform_9, window_bounds = array<i64: 32, 10>}]} {
    %c0 = arith.constant 0 : index
    %c0_0 = arith.constant 0 : index
    %0 = vector.load %arg2[%c0, %c0_0] : memref<32x24xbf16, #tpu.memory_space<vmem>>, vector<32x24xbf16>
    %cst = arith.constant 0.000000e+00 : bf16
    %1 = vector.broadcast %cst : bf16 to vector<32x24xbf16>
    %2 = arith.cmpf ogt, %0, %1 : vector<32x24xbf16>
    %cst_1 = arith.constant 2.001950e-01 : bf16
    %3 = vector.broadcast %cst_1 : bf16 to vector<32x24xbf16>
    %4 = arith.mulf %3, %0 : vector<32x24xbf16>
    %5 = arith.select %2, %0, %4 : vector<32x24xi1>, vector<32x24xbf16>
    %c0_2 = arith.constant 0 : index
    %c0_3 = arith.constant 0 : index
    %6 = vector.load %arg6[%c0_2, %c0_3] : memref<24x10xbf16, #tpu.memory_space<vmem>>, vector<24x10xbf16>
    %cst_4 = arith.constant dense<0.000000e+00> : vector<32x10xf32>
    %7 = tpu.matmul %5, %6, %cst_4 {dimension_numbers = #tpu.dot_dimension_numbers<[1], [0], [0], [1], [0, 0, 1, 1], [], []>} : vector<32x24xbf16>, vector<24x10xbf16>, vector<32x10xf32> -> vector<32x10xf32>
    %c0_5 = arith.constant 0 : index
    %c0_6 = arith.constant 0 : index
    %8 = vector.load %arg3[%c0_5, %c0_6] : memref<32x24xbf16, #tpu.memory_space<vmem>>, vector<32x24xbf16>
    %cst_7 = arith.constant 0.000000e+00 : bf16
    %9 = vector.broadcast %cst_7 : bf16 to vector<32x24xbf16>
    %10 = arith.cmpf ogt, %8, %9 : vector<32x24xbf16>
    %cst_8 = arith.constant 2.001950e-01 : bf16
    %11 = vector.broadcast %cst_8 : bf16 to vector<32x24xbf16>
    %12 = arith.mulf %11, %8 : vector<32x24xbf16>
    %13 = arith.select %10, %8, %12 : vector<32x24xi1>, vector<32x24xbf16>
    %c0_9 = arith.constant 0 : index
    %c0_10 = arith.constant 0 : index
    %14 = vector.load %arg7[%c0_9, %c0_10] : memref<24x10xbf16, #tpu.memory_space<vmem>>, vector<24x10xbf16>
    %cst_11 = arith.constant dense<0.000000e+00> : vector<32x10xf32>
    %15 = tpu.matmul %13, %14, %cst_11 {dimension_numbers = #tpu.dot_dimension_numbers<[1], [0], [0], [1], [0, 0, 1, 1], [], []>} : vector<32x24xbf16>, vector<24x10xbf16>, vector<32x10xf32> -> vector<32x10xf32>
    %16 = arith.addf %7, %15 : vector<32x10xf32>
    %c0_12 = arith.constant 0 : index
    %c0_13 = arith.constant 0 : index
    %17 = vector.load %arg4[%c0_12, %c0_13] : memref<32x24xbf16, #tpu.memory_space<vmem>>, vector<32x24xbf16>
    %cst_14 = arith.constant 0.000000e+00 : bf16
    %18 = vector.broadcast %cst_14 : bf16 to vector<32x24xbf16>
    %19 = arith.cmpf ogt, %17, %18 : vector<32x24xbf16>
    %cst_15 = arith.constant 2.001950e-01 : bf16
    %20 = vector.broadcast %cst_15 : bf16 to vector<32x24xbf16>
    %21 = arith.mulf %20, %17 : vector<32x24xbf16>
    %22 = arith.select %19, %17, %21 : vector<32x24xi1>, vector<32x24xbf16>
    %c0_16 = arith.constant 0 : index
    %c0_17 = arith.constant 0 : index
    %23 = vector.load %arg8[%c0_16, %c0_17] : memref<24x10xbf16, #tpu.memory_space<vmem>>, vector<24x10xbf16>
    %cst_18 = arith.constant dense<0.000000e+00> : vector<32x10xf32>
    %24 = tpu.matmul %22, %23, %cst_18 {dimension_numbers = #tpu.dot_dimension_numbers<[1], [0], [0], [1], [0, 0, 1, 1], [], []>} : vector<32x24xbf16>, vector<24x10xbf16>, vector<32x10xf32> -> vector<32x10xf32>
    %25 = arith.addf %16, %24 : vector<32x10xf32>
    %c0_19 = arith.constant 0 : index
    %c0_20 = arith.constant 0 : index
    %26 = vector.load %arg5[%c0_19, %c0_20] : memref<32x24xbf16, #tpu.memory_space<vmem>>, vector<32x24xbf16>
    %cst_21 = arith.constant 0.000000e+00 : bf16
    %27 = vector.broadcast %cst_21 : bf16 to vector<32x24xbf16>
    %28 = arith.cmpf ogt, %26, %27 : vector<32x24xbf16>
    %cst_22 = arith.constant 2.001950e-01 : bf16
    %29 = vector.broadcast %cst_22 : bf16 to vector<32x24xbf16>
    %30 = arith.mulf %29, %26 : vector<32x24xbf16>
    %31 = arith.select %28, %26, %30 : vector<32x24xi1>, vector<32x24xbf16>
    %c0_23 = arith.constant 0 : index
    %c0_24 = arith.constant 0 : index
    %32 = vector.load %arg9[%c0_23, %c0_24] : memref<24x10xbf16, #tpu.memory_space<vmem>>, vector<24x10xbf16>
    %cst_25 = arith.constant dense<0.000000e+00> : vector<32x10xf32>
    %33 = tpu.matmul %31, %32, %cst_25 {dimension_numbers = #tpu.dot_dimension_numbers<[1], [0], [0], [1], [0, 0, 1, 1], [], []>} : vector<32x24xbf16>, vector<24x10xbf16>, vector<32x10xf32> -> vector<32x10xf32>
    %34 = arith.addf %25, %33 : vector<32x10xf32>
    %c0_26 = arith.constant 0 : index
    %c0_27 = arith.constant 0 : index
    %35 = vector.load %arg10[%c0_26, %c0_27] : memref<1x10xf32, #tpu.memory_space<vmem>>, vector<1x10xf32>
    %36 = vector.broadcast %35 : vector<1x10xf32> to vector<32x10xf32>
    %37 = arith.addf %34, %36 : vector<32x10xf32>
    %38 = arith.truncf %37 : vector<32x10xf32> to vector<32x10xbf16>
    %c0_28 = arith.constant 0 : index
    %c0_29 = arith.constant 0 : index
    %39 = vector.load %arg11[%c0_28, %c0_29] : memref<32x10xbf16, #tpu.memory_space<vmem>>, vector<32x10xbf16>
    tpu.vector_store %arg11[%c0_28, %c0_29], %38 {strides = array<i32>} : memref<32x10xbf16, #tpu.memory_space<vmem>>, vector<32x10xbf16>,
    return
  }
  func.func @transform_0(%arg0: i32, %arg1: i32) -> (i32, i32) {
    %c0_i32 = arith.constant 0 : i32
    %c0_i32_0 = arith.constant 0 : i32
    return %arg0, %c0_i32 : i32, i32
  }
  func.func @transform_1(%arg0: i32, %arg1: i32) -> (i32, i32) {
    %c0_i32 = arith.constant 0 : i32
    %c0_i32_0 = arith.constant 0 : i32
    return %arg0, %c0_i32 : i32, i32
  }
  func.func @transform_2(%arg0: i32, %arg1: i32) -> (i32, i32) {
    %c0_i32 = arith.constant 0 : i32
    %c0_i32_0 = arith.constant 0 : i32
    return %arg0, %c0_i32 : i32, i32
  }
  func.func @transform_3(%arg0: i32, %arg1: i32) -> (i32, i32) {
    %c0_i32 = arith.constant 0 : i32
    %c0_i32_0 = arith.constant 0 : i32
    return %arg0, %c0_i32 : i32, i32
  }
  func.func @transform_4(%arg0: i32, %arg1: i32) -> (i32, i32) {
    %c0_i32 = arith.constant 0 : i32
    %c0_i32_0 = arith.constant 0 : i32
    return %c0_i32, %arg1 : i32, i32
  }
  func.func @transform_5(%arg0: i32, %arg1: i32) -> (i32, i32) {
    %c0_i32 = arith.constant 0 : i32
    %c0_i32_0 = arith.constant 0 : i32
    return %c0_i32, %arg1 : i32, i32
  }
  func.func @transform_6(%arg0: i32, %arg1: i32) -> (i32, i32) {
    %c0_i32 = arith.constant 0 : i32
    %c0_i32_0 = arith.constant 0 : i32
    return %c0_i32, %arg1 : i32, i32
  }
  func.func @transform_7(%arg0: i32, %arg1: i32) -> (i32, i32) {
    %c0_i32 = arith.constant 0 : i32
    %c0_i32_0 = arith.constant 0 : i32
    return %c0_i32, %arg1 : i32, i32
  }
  func.func @transform_8(%arg0: i32, %arg1: i32) -> (i32, i32) {
    %c0_i32 = arith.constant 0 : i32
    %c0_i32_0 = arith.constant 0 : i32
    return %c0_i32, %arg1 : i32, i32
  }
  func.func @transform_9(%arg0: i32, %arg1: i32) -> (i32, i32) {
    %c0_i32 = arith.constant 0 : i32
    return %arg0, %arg1 : i32, i32
  }
}

</mosaic_0001>

<llo_original>
// kernel: tpu_custom_call.1
$region0: #{tpu_custom_call.1}
  #allocation0 [shape = 'u32[]', space=smem, size = 0x4, offset = 0x4, fixed_abs, tag = 'smem constant byte address 0x4 - core index']
  #allocation1 [shape = 'u32[72,128]{1,0:T(1,128)}', space=vmem, size = 0x9000, scoped, tag = 'internal scratch']
  %s0 = inlined_call_operand.vmem [shape: bf16[32,24], index: 0, kind: input, shape index: {}]
  %s1 = inlined_call_operand.vmem [shape: bf16[32,24], index: 1, kind: input, shape index: {}]
  %s2 = inlined_call_operand.vmem [shape: bf16[32,24], index: 2, kind: input, shape index: {}]
  %s3 = inlined_call_operand.vmem [shape: bf16[32,24], index: 3, kind: input, shape index: {}]
  %s4 = inlined_call_operand.vmem [shape: bf16[24,10], index: 4, kind: input, shape index: {}]
  %s5 = inlined_call_operand.vmem [shape: bf16[24,10], index: 5, kind: input, shape index: {}]
  %s6 = inlined_call_operand.vmem [shape: bf16[24,10], index: 6, kind: input, shape index: {}]
  %s7 = inlined_call_operand.vmem [shape: bf16[24,10], index: 7, kind: input, shape index: {}]
  %s8 = inlined_call_operand.vmem [shape: f32[1,10], index: 8, kind: input, shape index: {}]
  %s9 = inlined_call_operand.vmem [shape: bf16[32,10], index: 9, kind: output, shape index: {}]
  %s10 = sld [smem:[#allocation0]]
  $region46: #{tpu_custom_call.1} parent=0
    _
  %s12 = ssub.s32 1, %s10
  %s13 = scalar_select 0, %s12, %s10
  // Predicated region
  $region2: #{tpu_custom_call.1} parent=0 // pred_check
    _
  $region3: #{tpu_custom_call.1} parent=0 // pred_check_branch
    %15 = sbr.rel (0) target = $region5
  $region4: #{tpu_custom_call.1} parent=0 // pred_region
    _
  $region5: #{tpu_custom_call.1} parent=0 // pred_fallthru
    _
  // Predicated region
  $region6: #{tpu_custom_call.1} parent=0 // pred_check
    _
  $region7: #{tpu_custom_call.1} parent=0 // pred_check_branch
    %17 = sbr.rel (0) target = $region9
  $region8: #{tpu_custom_call.1} parent=0 // pred_region
    _
  $region9: #{tpu_custom_call.1} parent=0 // pred_fallthru
    _
  // Predicated region
  $region10: #{tpu_custom_call.1} parent=0 // pred_check
    _
  $region11: #{tpu_custom_call.1} parent=0 // pred_check_branch
    %19 = sbr.rel (0) target = $region13
  $region12: #{tpu_custom_call.1} parent=0 // pred_region
    _
  $region13: #{tpu_custom_call.1} parent=0 // pred_fallthru
    _
  // Predicated region
  $region14: #{tpu_custom_call.1} parent=0 // pred_check
    _
  $region15: #{tpu_custom_call.1} parent=0 // pred_check_branch
    %21 = sbr.rel (0) target = $region17
  $region16: #{tpu_custom_call.1} parent=0 // pred_region
    _
  $region17: #{tpu_custom_call.1} parent=0 // pred_fallthru
    _
  // Predicated region
  $region18: #{tpu_custom_call.1} parent=0 // pred_check
    _
  $region19: #{tpu_custom_call.1} parent=0 // pred_check_branch
    %23 = sbr.rel (0) target = $region21
  $region20: #{tpu_custom_call.1} parent=0 // pred_region
    _
  $region21: #{tpu_custom_call.1} parent=0 // pred_fallthru
    _
  // Predicated region
  $region22: #{tpu_custom_call.1} parent=0 // pred_check
    _
  $region23: #{tpu_custom_call.1} parent=0 // pred_check_branch
    %25 = sbr.rel (0) target = $region25
  $region24: #{tpu_custom_call.1} parent=0 // pred_region
    _
  $region25: #{tpu_custom_call.1} parent=0 // pred_fallthru
    _
  // Predicated region
  $region26: #{tpu_custom_call.1} parent=0 // pred_check
    _
  $region27: #{tpu_custom_call.1} parent=0 // pred_check_branch
    %27 = sbr.rel (0) target = $region29
  $region28: #{tpu_custom_call.1} parent=0 // pred_region
    _
  $region29: #{tpu_custom_call.1} parent=0 // pred_fallthru
    _
  // Predicated region
  $region30: #{tpu_custom_call.1} parent=0 // pred_check
    _
  $region31: #{tpu_custom_call.1} parent=0 // pred_check_branch
    %29 = sbr.rel (0) target = $region33
  $region32: #{tpu_custom_call.1} parent=0 // pred_region
    _
  $region33: #{tpu_custom_call.1} parent=0 // pred_fallthru
    _
  // Predicated region
  $region34: #{tpu_custom_call.1} parent=0 // pred_check
    _
  $region35: #{tpu_custom_call.1} parent=0 // pred_check_branch
    %31 = sbr.rel (0) target = $region37
  $region36: #{tpu_custom_call.1} parent=0 // pred_region
    _
  $region37: #{tpu_custom_call.1} parent=0 // pred_fallthru
    _
  %v33 = vld [vmem:[%s0] sm:$0xf]
  %v34 = vld [vmem:[%s0 + $0x4] sm:$0xf]
  %v35 = vld [vmem:[%s0 + $0x8] sm:$0xf]
  %v36 = vld [vmem:[%s0 + $0xc] sm:$0xf]
  %v37 = vunpack.c.l.bf16 %v33
  %v38 = vunpack.c.l.bf16 %v34
  %v39 = vunpack.c.l.bf16 %v35
  %v40 = vunpack.c.l.bf16 %v36
  %vm41 = vcmp.gt.f32.partialorder %v37, 0.0
  %vm42 = vcmp.gt.f32.partialorder %v38, 0.0
  %vm43 = vcmp.gt.f32.partialorder %v39, 0.0
  %vm44 = vcmp.gt.f32.partialorder %v40, 0.0
  %v45 = vmul.f32 %v37, 0.20019531
  %v46 = vmul.f32 %v38, 0.20019531
  %v47 = vmul.f32 %v39, 0.20019531
  %v48 = vmul.f32 %v40, 0.20019531
  %v49 = vpack.c.bf16 %v45, %v45
  %v50 = vpack.c.bf16 %v46, %v46
  %v51 = vpack.c.bf16 %v47, %v47
  %v52 = vpack.c.bf16 %v48, %v48
  %vm53 = vmpackc.low %vm41, %vm41
  %vm54 = vmpackc.low %vm42, %vm42
  %vm55 = vmpackc.low %vm43, %vm43
  %vm56 = vmpackc.low %vm44, %vm44
  %v57 = vsel %vm53, %v33, %v49
  %v58 = vsel %vm54, %v34, %v50
  %v59 = vsel %vm55, %v35, %v51
  %v60 = vsel %vm56, %v36, %v52
  %v61 = vld [vmem:[%s4] sm:$0xf]
  %v62 = vld [vmem:[%s4 + $0x4] sm:$0xf]
  %v63 = vld [vmem:[%s4 + $0x8] sm:$0xf]
  %v64 = vld [vmem:[%s1] sm:$0xf]
  %v65 = vld [vmem:[%s1 + $0x4] sm:$0xf]
  %v66 = vld [vmem:[%s1 + $0x8] sm:$0xf]
  %v67 = vld [vmem:[%s1 + $0xc] sm:$0xf]
  %v68 = vunpack.c.l.bf16 %v64
  %v69 = vunpack.c.l.bf16 %v65
  %v70 = vunpack.c.l.bf16 %v66
  %v71 = vunpack.c.l.bf16 %v67
  %vm72 = vcmp.gt.f32.partialorder %v68, 0.0
  %vm73 = vcmp.gt.f32.partialorder %v69, 0.0
  %vm74 = vcmp.gt.f32.partialorder %v70, 0.0
  %vm75 = vcmp.gt.f32.partialorder %v71, 0.0
  %v76 = vmul.f32 %v68, 0.20019531
  %v77 = vmul.f32 %v69, 0.20019531
  %v78 = vmul.f32 %v70, 0.20019531
  %v79 = vmul.f32 %v71, 0.20019531
  %v80 = vpack.c.bf16 %v76, %v76
  %v81 = vpack.c.bf16 %v77, %v77
  %v82 = vpack.c.bf16 %v78, %v78
  %v83 = vpack.c.bf16 %v79, %v79
  %vm84 = vmpackc.low %vm72, %vm72
  %vm85 = vmpackc.low %vm73, %vm73
  %vm86 = vmpackc.low %vm74, %vm74
  %vm87 = vmpackc.low %vm75, %vm75
  %v88 = vsel %vm84, %v64, %v80
  %v89 = vsel %vm85, %v65, %v81
  %v90 = vsel %vm86, %v66, %v82
  %v91 = vsel %vm87, %v67, %v83
  %v92 = vld [vmem:[%s5] sm:$0xf]
  %v93 = vld [vmem:[%s5 + $0x4] sm:$0xf]
  %v94 = vld [vmem:[%s5 + $0x8] sm:$0xf]
  %v99 = vunpack.c.l.b16 %v88
  %v100 = vunpack.c.l.b16 %v89
  %v101 = vunpack.c.l.b16 %v90
  %v102 = vunpack.c.l.b16 %v91
  %v103 = vpack.c.b16 %v100, %v99
  %v104 = vpack.c.b16 %v102, %v101
  %v108 = vunpack.c.l.b16 %v92
  %v109 = vunpack.c.l.b16 %v93
  %v110 = vunpack.c.l.b16 %v94
  %v111 = vpack.c.b16 %v109, %v108
  %v112 = vpack.c.b16 %v110, %v110
  %vm114 = vcmask 195584
  %v116 = vsel %vm114, %v103, 0
  %v119 = vsel %vm114, %v104, 0
  %vm121 = vcmask 1043456
  %v123 = vsel %vm121, %v112, 0
  %125 = vmatpush.bf16.msra.mxu0 0
  %126 = vmatpush.bf16.msra.mxu0 0
  %127 = vmatpush.bf16.msra.mxu0 0
  %128 = vmatpush.bf16.msra.mxu0 0
  %129 = vmatpush.bf16.msra.mxu0 0
  %130 = vmatpush.bf16.msra.mxu0 0
  %131 = vmatpush.bf16.msra.mxu0 %v123
  %132 = vmatpush.bf16.msra.mxu0 %v111
  %133 = vmatmul.bf16.gmra.mxu0 %v116
  %v134 = vpop.f32.mrf.mxu0
  %v135 = vadd.f32 0.0, %v134
  %v136 = vpop.f32.mrf.mxu0
  %v137 = vadd.f32 0.0, %v136
  %138 = vmatmul.bf16.gmra.mxu0 %v119
  %v139 = vpop.f32.mrf.mxu0
  %v140 = vadd.f32 0.0, %v139
  %v141 = vpop.f32.mrf.mxu0
  %v142 = vadd.f32 0.0, %v141
  %143 = vdwg.mxu0
  %v148 = vunpack.c.l.b16 %v57
  %v149 = vunpack.c.l.b16 %v58
  %v150 = vunpack.c.l.b16 %v59
  %v151 = vunpack.c.l.b16 %v60
  %v152 = vpack.c.b16 %v149, %v148
  %v153 = vpack.c.b16 %v151, %v150
  %v157 = vunpack.c.l.b16 %v61
  %v158 = vunpack.c.l.b16 %v62
  %v159 = vunpack.c.l.b16 %v63
  %v160 = vpack.c.b16 %v158, %v157
  %v161 = vpack.c.b16 %v159, %v159
  %v164 = vsel %vm114, %v152, 0
  %v167 = vsel %vm114, %v153, 0
  %v170 = vsel %vm121, %v161, 0
  %172 = vmatpush.bf16.msra.mxu0 0
  %173 = vmatpush.bf16.msra.mxu0 0
  %174 = vmatpush.bf16.msra.mxu0 0
  %175 = vmatpush.bf16.msra.mxu0 0
  %176 = vmatpush.bf16.msra.mxu0 0
  %177 = vmatpush.bf16.msra.mxu0 0
  %178 = vmatpush.bf16.msra.mxu0 %v170
  %179 = vmatpush.bf16.msra.mxu0 %v160
  %180 = vmatmul.bf16.gmra.mxu0 %v164
  %v181 = vpop.f32.mrf.mxu0
  %v182 = vadd.f32 %v135, %v181
  %v183 = vpop.f32.mrf.mxu0
  %v184 = vadd.f32 %v137, %v183
  %185 = vmatmul.bf16.gmra.mxu0 %v167
  %v186 = vpop.f32.mrf.mxu0
  %v187 = vadd.f32 %v140, %v186
  %v188 = vpop.f32.mrf.mxu0
  %v189 = vadd.f32 %v142, %v188
  %190 = vdwg.mxu0
  %v191 = vld [vmem:[%s2] sm:$0xf]
  %v192 = vld [vmem:[%s2 + $0x4] sm:$0xf]
  %v193 = vld [vmem:[%s2 + $0x8] sm:$0xf]
  %v194 = vld [vmem:[%s2 + $0xc] sm:$0xf]
  %v195 = vunpack.c.l.bf16 %v191
  %v196 = vunpack.c.l.bf16 %v192
  %v197 = vunpack.c.l.bf16 %v193
  %v198 = vunpack.c.l.bf16 %v194
  %vm199 = vcmp.gt.f32.partialorder %v195, 0.0
  %vm200 = vcmp.gt.f32.partialorder %v196, 0.0
  %vm201 = vcmp.gt.f32.partialorder %v197, 0.0
  %vm202 = vcmp.gt.f32.partialorder %v198, 0.0
  %v203 = vmul.f32 %v195, 0.20019531
  %v204 = vmul.f32 %v196, 0.20019531
  %v205 = vmul.f32 %v197, 0.20019531
  %v206 = vmul.f32 %v198, 0.20019531
  %v207 = vpack.c.bf16 %v203, %v203
  %v208 = vpack.c.bf16 %v204, %v204
  %v209 = vpack.c.bf16 %v205, %v205
  %v210 = vpack.c.bf16 %v206, %v206
  %vm211 = vmpackc.low %vm199, %vm199
  %vm212 = vmpackc.low %vm200, %vm200
  %vm213 = vmpackc.low %vm201, %vm201
  %vm214 = vmpackc.low %vm202, %vm202
  %v215 = vsel %vm211, %v191, %v207
  %v216 = vsel %vm212, %v192, %v208
  %v217 = vsel %vm213, %v193, %v209
  %v218 = vsel %vm214, %v194, %v210
  %v219 = vld [vmem:[%s6] sm:$0xf]
  %v220 = vld [vmem:[%s6 + $0x4] sm:$0xf]
  %v221 = vld [vmem:[%s6 + $0x8] sm:$0xf]
  %v226 = vunpack.c.l.b16 %v215
  %v227 = vunpack.c.l.b16 %v216
  %v228 = vunpack.c.l.b16 %v217
  %v229 = vunpack.c.l.b16 %v218
  %v230 = vpack.c.b16 %v227, %v226
  %v231 = vpack.c.b16 %v229, %v228
  %v235 = vunpack.c.l.b16 %v219
  %v236 = vunpack.c.l.b16 %v220
  %v237 = vunpack.c.l.b16 %v221
  %v238 = vpack.c.b16 %v236, %v235
  %v239 = vpack.c.b16 %v237, %v237
  %v242 = vsel %vm114, %v230, 0
  %v245 = vsel %vm114, %v231, 0
  %v248 = vsel %vm121, %v239, 0
  %250 = vmatpush.bf16.msra.mxu0 0
  %251 = vmatpush.bf16.msra.mxu0 0
  %252 = vmatpush.bf16.msra.mxu0 0
  %253 = vmatpush.bf16.msra.mxu0 0
  %254 = vmatpush.bf16.msra.mxu0 0
  %255 = vmatpush.bf16.msra.mxu0 0
  %256 = vmatpush.bf16.msra.mxu0 %v248
  %257 = vmatpush.bf16.msra.mxu0 %v238
  %258 = vmatmul.bf16.gmra.mxu0 %v242
  %v259 = vpop.f32.mrf.mxu0
  %v260 = vadd.f32 0.0, %v259
  %v261 = vpop.f32.mrf.mxu0
  %v262 = vadd.f32 0.0, %v261
  %263 = vmatmul.bf16.gmra.mxu0 %v245
  %v264 = vpop.f32.mrf.mxu0
  %v265 = vadd.f32 0.0, %v264
  %v266 = vpop.f32.mrf.mxu0
  %v267 = vadd.f32 0.0, %v266
  %268 = vdwg.mxu0
  %v269 = vadd.f32 %v182, %v260
  %v270 = vadd.f32 %v184, %v262
  %v271 = vadd.f32 %v187, %v265
  %v272 = vadd.f32 %v189, %v267
  %v273 = vld [vmem:[%s3] sm:$0xf]
  %v274 = vld [vmem:[%s3 + $0x4] sm:$0xf]
  %v275 = vld [vmem:[%s3 + $0x8] sm:$0xf]
  %v276 = vld [vmem:[%s3 + $0xc] sm:$0xf]
  %v277 = vunpack.c.l.bf16 %v273
  %v278 = vunpack.c.l.bf16 %v274
  %v279 = vunpack.c.l.bf16 %v275
  %v280 = vunpack.c.l.bf16 %v276
  %vm281 = vcmp.gt.f32.partialorder %v277, 0.0
  %vm282 = vcmp.gt.f32.partialorder %v278, 0.0
  %vm283 = vcmp.gt.f32.partialorder %v279, 0.0
  %vm284 = vcmp.gt.f32.partialorder %v280, 0.0
  %v285 = vmul.f32 %v277, 0.20019531
  %v286 = vmul.f32 %v278, 0.20019531
  %v287 = vmul.f32 %v279, 0.20019531
  %v288 = vmul.f32 %v280, 0.20019531
  %v289 = vpack.c.bf16 %v285, %v285
  %v290 = vpack.c.bf16 %v286, %v286
  %v291 = vpack.c.bf16 %v287, %v287
  %v292 = vpack.c.bf16 %v288, %v288
  %vm293 = vmpackc.low %vm281, %vm281
  %vm294 = vmpackc.low %vm282, %vm282
  %vm295 = vmpackc.low %vm283, %vm283
  %vm296 = vmpackc.low %vm284, %vm284
  %v297 = vsel %vm293, %v273, %v289
  %v298 = vsel %vm294, %v274, %v290
  %v299 = vsel %vm295, %v275, %v291
  %v300 = vsel %vm296, %v276, %v292
  %v301 = vld [vmem:[%s7] sm:$0xf]
  %v302 = vld [vmem:[%s7 + $0x4] sm:$0xf]
  %v303 = vld [vmem:[%s7 + $0x8] sm:$0xf]
  %v308 = vunpack.c.l.b16 %v297
  %v309 = vunpack.c.l.b16 %v298
  %v310 = vunpack.c.l.b16 %v299
  %v311 = vunpack.c.l.b16 %v300
  %v312 = vpack.c.b16 %v309, %v308
  %v313 = vpack.c.b16 %v311, %v310
  %v317 = vunpack.c.l.b16 %v301
  %v318 = vunpack.c.l.b16 %v302
  %v319 = vunpack.c.l.b16 %v303
  %v320 = vpack.c.b16 %v318, %v317
  %v321 = vpack.c.b16 %v319, %v319
  %v324 = vsel %vm114, %v312, 0
  %v327 = vsel %vm114, %v313, 0
  %v330 = vsel %vm121, %v321, 0
  %332 = vmatpush.bf16.msra.mxu0 0
  %333 = vmatpush.bf16.msra.mxu0 0
  %334 = vmatpush.bf16.msra.mxu0 0
  %335 = vmatpush.bf16.msra.mxu0 0
  %336 = vmatpush.bf16.msra.mxu0 0
  %337 = vmatpush.bf16.msra.mxu0 0
  %338 = vmatpush.bf16.msra.mxu0 %v330
  %339 = vmatpush.bf16.msra.mxu0 %v320
  %340 = vmatmul.bf16.gmra.mxu0 %v324
  %v341 = vpop.f32.mrf.mxu0
  %v342 = vadd.f32 0.0, %v341
  %v343 = vpop.f32.mrf.mxu0
  %v344 = vadd.f32 0.0, %v343
  %345 = vmatmul.bf16.gmra.mxu0 %v327
  %v346 = vpop.f32.mrf.mxu0
  %v347 = vadd.f32 0.0, %v346
  %v348 = vpop.f32.mrf.mxu0
  %v349 = vadd.f32 0.0, %v348
  %350 = vdwg.mxu0
  %v351 = vadd.f32 %v269, %v342
  %v352 = vadd.f32 %v270, %v344
  %v353 = vadd.f32 %v271, %v347
  %v354 = vadd.f32 %v272, %v349
  %v355 = vld [vmem:[%s8] sm:$0x1]
  %v357 = vperm.slane %v355, 0
  %v359 = vadd.f32 %v351, %v357
  %v360 = vadd.f32 %v352, %v357
  %v361 = vadd.f32 %v353, %v357
  %v362 = vadd.f32 %v354, %v357
  %v363 = vpack.c.bf16 %v359, %v359
  %v364 = vpack.c.bf16 %v360, %v360
  %v365 = vpack.c.bf16 %v361, %v361
  %v366 = vpack.c.bf16 %v362, %v362
  %vm367 = vcmask 76800
  %368 = vst.msk [vmem:[%s9] sm:$0xf] %vm367, %v363
  %369 = vst.msk [vmem:[%s9 + $0x4] sm:$0xf] %vm367, %v364
  %370 = vst.msk [vmem:[%s9 + $0x8] sm:$0xf] %vm367, %v365
  %371 = vst.msk [vmem:[%s9 + $0xc] sm:$0xf] %vm367, %v366
  // Predicated region
  $region38: #{tpu_custom_call.1} parent=0 // pred_check
    _
  $region39: #{tpu_custom_call.1} parent=0 // pred_check_branch
    %373 = sbr.rel (0) target = $region41
  $region40: #{tpu_custom_call.1} parent=0 // pred_region
    _
  $region41: #{tpu_custom_call.1} parent=0 // pred_fallthru
    _
  // Predicated region
  $region42: #{tpu_custom_call.1} parent=0 // pred_check
    _
  $region43: #{tpu_custom_call.1} parent=0 // pred_check_branch
    %375 = sbr.rel (0) target = $region45
  $region44: #{tpu_custom_call.1} parent=0 // pred_region
    _
  $region45: #{tpu_custom_call.1} parent=0 // pred_fallthru
    _

</llo_original>
